<compile_context>
chip_gen: v5e
topology: v5e:2x2
jax: 0.10.0
libtpu: 0.0.40
codegen_flags: <defaults>
</compile_context>

<pallas_src>
import functools

import jax
import jax.numpy as jnp
from jax.experimental import pallas as pl
from jax.experimental.pallas import tpu as pltpu


def _round_up(x, m):
    return (x + m - 1) // m * m


def _default_tiles():
    """Generation-specific MXU-aligned tile sizes (tm, tn, tk)."""
    try:
        kind = jax.devices()[0].device_kind.lower()
    except Exception:
        kind = ""
    if ("v6" in kind) or ("v7" in kind):
        return 256, 256, 512          # 2x256x256 MXU generations
    return 128, 256, 512              # v5e & older: 128x128 MXU geometry


def _linear_kernel(x_ref, w_ref, b_ref, o_ref, acc_ref):
    # x_ref: (tm, tk) bf16   w_ref: (tk, tn) bf16   b_ref: (1, tn) f32
    # o_ref: (tm, tn) f32    acc_ref: (tm, tn) f32 scratch (resident across K)
    k = pl.program_id(2)

    @pl.when(k == 0)
    def _init():
        acc_ref[...] = jnp.zeros_like(acc_ref)

    acc_ref[...] += jnp.dot(x_ref[...], w_ref[...],
                            preferred_element_type=jnp.float32)

    @pl.when(k == pl.num_programs(2) - 1)
    def _epilogue():
        o_ref[...] = (acc_ref[...] + b_ref[...]).astype(o_ref.dtype)


@functools.partial(jax.jit, static_argnames=("tm", "tn", "tk", "compute_dtype"))
def linear_pallas(x2d, w_t, bias, *, tm, tn, tk, compute_dtype=jnp.bfloat16):
    """y = x2d @ w_t + bias via a tiled Pallas TPU matmul.

    x2d:  (M, K) float32
    w_t:  (K, N) float32   (pre-transposed PyTorch weight)
    bias: (N,)   float32
    """
    M, K = x2d.shape
    _, N = w_t.shape

    # Clamp tiles to the (rounded-up) problem size so small shapes don't over-pad,
    # while preserving MXU/vreg alignment (sublane multiple of 8, lane multiple of 128).
    tm = min(tm, _round_up(M, 8))
    tn = min(tn, _round_up(N, 128))
    tk = min(tk, _round_up(K, 128))
    Mp, Kp, Np = _round_up(M, tm), _round_up(K, tk), _round_up(N, tn)

    x_p = x2d.astype(compute_dtype)
    if (Mp, Kp) != (M, K):
        x_p = jnp.pad(x_p, ((0, Mp - M), (0, Kp - K)))
    w_p = w_t.astype(compute_dtype)
    if (Kp, Np) != (K, N):
        w_p = jnp.pad(w_p, ((0, Kp - K), (0, Np - N)))
    b_p = bias.astype(jnp.float32).reshape(1, N)
    if Np != N:
        b_p = jnp.pad(b_p, ((0, 0), (0, Np - N)))

    grid = (Mp // tm, Np // tn, Kp // tk)
    flops = 2 * Mp * Np * Kp
    bytes_accessed = (Mp * Kp + Kp * Np) * x_p.dtype.itemsize + Mp * Np * 4 + Np * 4

    y = pl.pallas_call(
        _linear_kernel,
        out_shape=jax.ShapeDtypeStruct((Mp, Np), jnp.float32),
        grid_spec=pltpu.PrefetchScalarGridSpec(
            num_scalar_prefetch=0,
            grid=grid,
            in_specs=[
                pl.BlockSpec((tm, tk), lambda i, j, k: (i, k)),   # x tile
                pl.BlockSpec((tk, tn), lambda i, j, k: (k, j)),   # weight tile
                pl.BlockSpec((1, tn), lambda i, j, k: (0, j)),    # bias (constant in k)
            ],
            out_specs=pl.BlockSpec((tm, tn), lambda i, j, k: (i, j)),
            scratch_shapes=[pltpu.VMEM((tm, tn), jnp.float32)],
        ),
        compiler_params=pltpu.CompilerParams(
            dimension_semantics=("parallel", "parallel", "arbitrary"),
            vmem_limit_bytes=48 * 1024 * 1024,   # explicit budget; fits v7x's 64 MiB
        ),
        cost_estimate=pl.CostEstimate(flops=flops, transcendentals=0,
                                      bytes_accessed=bytes_accessed),
    )(x_p, w_p, b_p)

    if (Mp, Np) != (M, N):
        y = y[:M, :N]
    return y


# --- GradientClampingFunction semantics: clamp incoming cotangent to [-10, 10] ----
@jax.custom_vjp
def clamped_linear(x2d, w_t, bias):
    tm, tn, tk = _default_tiles()
    return linear_pallas(x2d, w_t, bias, tm=tm, tn=tn, tk=tk)


def _clamped_linear_fwd(x2d, w_t, bias):
    return clamped_linear(x2d, w_t, bias), (x2d, w_t)


def _clamped_linear_bwd(res, g):
    x2d, w_t = res
    gc = jnp.clip(g, -10.0, 10.0).astype(jnp.float32)         # grad_output.clamp(-10, 10)
    dx = (gc @ w_t.astype(jnp.float32).T).astype(x2d.dtype)
    dw_t = (x2d.astype(jnp.float32).T @ gc).astype(w_t.dtype)
    db = gc.sum(axis=0)
    return dx, dw_t, db


clamped_linear.defvjp(_clamped_linear_fwd, _clamped_linear_bwd)


def gradient_clamped_module_forward(x, w_t, bias):
    """Forward of GradientClampedModule wrapping nn.Linear.

    x:    (batch, seq, in_features)
    w_t:  (in_features, out_features)  -- PyTorch weight pre-transposed once at setup
    bias: (out_features,)
    returns (batch, seq, out_features)
    """
    batch, seq, in_features = x.shape
    out_features = w_t.shape[1]
    y2d = clamped_linear(x.reshape(batch * seq, in_features), w_t, bias)
    return y2d.reshape(batch, seq, out_features)


if __name__ == "__main__":
    # small shapes: batch=2, seq=8, hidden_in=32, hidden_out=128
    batch, seq, in_features, out_features = 2, 8, 32, 128

    key = jax.random.PRNGKey(0)
    kx, kw, kb = jax.random.split(key, 3)

    bound = 1.0 / (in_features ** 0.5)
    weight = jax.random.uniform(kw, (out_features, in_features),
                                jnp.float32, -bound, bound)   # PyTorch (out, in) layout
    bias = jax.random.uniform(kb, (out_features,), jnp.float32, -bound, bound)
    x = jax.random.normal(kx, (batch, seq, in_features), jnp.float32)

    # Pre-layout the weight ONCE (module-setup time), not per forward call.
    w_t = jnp.asarray(weight.T)   # (in_features, out_features)

    y = gradient_clamped_module_forward(x, w_t, bias)
    y = jax.block_until_ready(y)
    assert y.shape == (batch, seq, out_features)

    # Forward reference (bf16-cast inputs, f32 accumulate, like the kernel).
    xb = x.reshape(-1, in_features).astype(jnp.bfloat16).astype(jnp.float32)
    wb = w_t.astype(jnp.bfloat16).astype(jnp.float32)
    y_ref = (xb @ wb + bias).reshape(batch, seq, out_features)
    assert jnp.allclose(y, y_ref, atol=1e-3, rtol=1e-3), \
        float(jnp.max(jnp.abs(y - y_ref)))

    # Backward smoke test: cotangent 100 everywhere -> clamped to 10.
    x2d = x.reshape(-1, in_features)
    dx = jax.grad(lambda xx: 100.0 * jnp.sum(clamped_linear(xx, w_t, bias)))(x2d)
    dx = jax.block_until_ready(dx)
    dx_ref = jnp.full((x2d.shape[0], out_features), 10.0, jnp.float32) @ w_t.T
    assert jnp.allclose(dx, dx_ref, atol=1e-3, rtol=1e-3)

    print("KERNEL_OK")
</pallas_src>

<mosaic_0001>
module attributes {stable_mosaic.version = 11 : i64} {
  func.func @_linear_kernel(%arg0: i32, %arg1: i32, %arg2: i32, %arg3: memref<16x128xbf16, #tpu.memory_space<vmem>>, %arg4: memref<128x128xbf16, #tpu.memory_space<vmem>>, %arg5: memref<1x128xf32, #tpu.memory_space<vmem>>, %arg6: memref<16x128xf32, #tpu.memory_space<vmem>>, %arg7: memref<16x128xf32, #tpu.memory_space<vmem>>) attributes {dimension_semantics = [#tpu.dimension_semantics<parallel>, #tpu.dimension_semantics<parallel>, #tpu.dimension_semantics<arbitrary>], iteration_bounds = array<i64: 1, 1, 1>, scalar_prefetch = 0 : i64, scratch_operands = 1 : i64, tpu.core_type = #tpu.core_type<tc>, window_params = [{transform_indices = @transform_0, window_bounds = array<i64: 16, 128>}, {transform_indices = @transform_1, window_bounds = array<i64: 128, 128>}, {transform_indices = @transform_2, window_bounds = array<i64: 1, 128>}, {transform_indices = @transform_3, window_bounds = array<i64: 16, 128>}]} {
    %c0_i32 = arith.constant 0 : i32
    %0 = arith.cmpi eq, %arg2, %c0_i32 : i32
    %1 = arith.extui %0 : i1 to i32
    %c0_i32_0 = arith.constant 0 : i32
    %2 = arith.cmpi ne, %1, %c0_i32_0 : i32
    scf.if %2 {
      %cst_10 = arith.constant 0.000000e+00 : f32
      %12 = vector.broadcast %cst_10 : f32 to vector<16x128xf32>
      %c0_11 = arith.constant 0 : index
      %c0_12 = arith.constant 0 : index
      %13 = vector.load %arg7[%c0_11, %c0_12] : memref<16x128xf32, #tpu.memory_space<vmem>>, vector<16x128xf32>
      tpu.vector_store %arg7[%c0_11, %c0_12], %12 {strides = array<i32>} : memref<16x128xf32, #tpu.memory_space<vmem>>, vector<16x128xf32>,
    } else {
    }
    %c0 = arith.constant 0 : index
    %c0_1 = arith.constant 0 : index
    %3 = vector.load %arg7[%c0, %c0_1] : memref<16x128xf32, #tpu.memory_space<vmem>>, vector<16x128xf32>
    %c0_2 = arith.constant 0 : index
    %c0_3 = arith.constant 0 : index
    %4 = vector.load %arg3[%c0_2, %c0_3] : memref<16x128xbf16, #tpu.memory_space<vmem>>, vector<16x128xbf16>
    %c0_4 = arith.constant 0 : index
    %c0_5 = arith.constant 0 : index
    %5 = vector.load %arg4[%c0_4, %c0_5] : memref<128x128xbf16, #tpu.memory_space<vmem>>, vector<128x128xbf16>
    %cst = arith.constant dense<0.000000e+00> : vector<16x128xf32>
    %6 = tpu.matmul %4, %5, %cst {dimension_numbers = #tpu.dot_dimension_numbers<[1], [0], [0], [1], [0, 0, 1, 1], [], []>} : vector<16x128xbf16>, vector<128x128xbf16>, vector<16x128xf32> -> vector<16x128xf32>
    %7 = arith.addf %3, %6 : vector<16x128xf32>
    %c0_6 = arith.constant 0 : index
    %c0_7 = arith.constant 0 : index
    %8 = vector.load %arg7[%c0_6, %c0_7] : memref<16x128xf32, #tpu.memory_space<vmem>>, vector<16x128xf32>
    tpu.vector_store %arg7[%c0_6, %c0_7], %7 {strides = array<i32>} : memref<16x128xf32, #tpu.memory_space<vmem>>, vector<16x128xf32>,
    %c0_i32_8 = arith.constant 0 : i32
    %9 = arith.cmpi eq, %arg2, %c0_i32_8 : i32
    %10 = arith.extui %9 : i1 to i32
    %c0_i32_9 = arith.constant 0 : i32
    %11 = arith.cmpi ne, %10, %c0_i32_9 : i32
    scf.if %11 {
      %c0_10 = arith.constant 0 : index
      %c0_11 = arith.constant 0 : index
      %12 = vector.load %arg7[%c0_10, %c0_11] : memref<16x128xf32, #tpu.memory_space<vmem>>, vector<16x128xf32>
      %c0_12 = arith.constant 0 : index
      %c0_13 = arith.constant 0 : index
      %13 = vector.load %arg5[%c0_12, %c0_13] : memref<1x128xf32, #tpu.memory_space<vmem>>, vector<1x128xf32>
      %14 = vector.broadcast %13 : vector<1x128xf32> to vector<16x128xf32>
      %15 = arith.addf %12, %14 : vector<16x128xf32>
      %c0_14 = arith.constant 0 : index
      %c0_15 = arith.constant 0 : index
      %16 = vector.load %arg6[%c0_14, %c0_15] : memref<16x128xf32, #tpu.memory_space<vmem>>, vector<16x128xf32>
      tpu.vector_store %arg6[%c0_14, %c0_15], %15 {strides = array<i32>} : memref<16x128xf32, #tpu.memory_space<vmem>>, vector<16x128xf32>,
    } else {
    }
    return
  }
  func.func @transform_0(%arg0: i32, %arg1: i32, %arg2: i32) -> (i32, i32) {
    %c0_i32 = arith.constant 0 : i32
    return %arg0, %arg2 : i32, i32
  }
  func.func @transform_1(%arg0: i32, %arg1: i32, %arg2: i32) -> (i32, i32) {
    %c0_i32 = arith.constant 0 : i32
    return %arg2, %arg1 : i32, i32
  }
  func.func @transform_2(%arg0: i32, %arg1: i32, %arg2: i32) -> (i32, i32) {
    %c0_i32 = arith.constant 0 : i32
    %c0_i32_0 = arith.constant 0 : i32
    return %c0_i32, %arg1 : i32, i32
  }
  func.func @transform_3(%arg0: i32, %arg1: i32, %arg2: i32) -> (i32, i32) {
    %c0_i32 = arith.constant 0 : i32
    return %arg0, %arg1 : i32, i32
  }
}

</mosaic_0001>

<llo_original>
// kernel: linear_pallas.1
$region0: #{linear_pallas.1}
  #allocation0 [shape = 'u32[]', space=smem, size = 0x4, offset = 0x4, fixed_abs, tag = 'smem constant byte address 0x4 - core index']
  #allocation1 [shape = 'u32[72,128]{1,0:T(1,128)}', space=vmem, size = 0x9000, scoped, tag = 'internal scratch']
  #allocation2 [shape = 'f32[16,128]{1,0:T(8,128)}', space=vmem, size = 0x2000, scoped, tag = 'scratch operand']
  %s0 = inlined_call_operand.vmem [shape: bf16[16,128], index: 0, kind: input, shape index: {}]
  %s1 = inlined_call_operand.vmem [shape: bf16[128,128], index: 1, kind: input, shape index: {}]
  %s2 = inlined_call_operand.vmem [shape: f32[1,128], index: 2, kind: input, shape index: {}]
  %s3 = inlined_call_operand.hbm [shape: f32[16,128], index: 3, kind: output, shape index: {}]
  %s4 = sld [smem:[#allocation0]]
  $region30: #{linear_pallas.1} parent=0
    _
  %s6 = ssub.s32 1, %s4
  %s7 = scalar_select 0, %s6, %s4
  $region1: #{linear_pallas.1} parent=0
    #allocation3 [shape = 'u8[8192]{0}', space=vmem, size = 0x2000, scoped, tag = 'output window, operand 0, single buffered']
    #allocation4 [shape = 's32[1]{0}', space=sflag, size = 0x4, scoped, tag = 'scoped memory for linear_pallas.1']
    %8 = vsyncpa [#allocation4], 0
    // Predicated region
    $region2: #{linear_pallas.1} parent=1 // pred_check
      _
    $region3: #{linear_pallas.1} parent=1 // pred_check_branch
      %10 = sbr.rel (0) target = $region5
    $region4: #{linear_pallas.1} parent=1 // pred_region
      _
    $region5: #{linear_pallas.1} parent=1 // pred_fallthru
      _
    // Predicated region
    $region6: #{linear_pallas.1} parent=1 // pred_check
      _
    $region7: #{linear_pallas.1} parent=1 // pred_check_branch
      %12 = sbr.rel (0) target = $region9
    $region8: #{linear_pallas.1} parent=1 // pred_region
      _
    $region9: #{linear_pallas.1} parent=1 // pred_fallthru
      _
    // Predicated region
    $region10: #{linear_pallas.1} parent=1 // pred_check
      _
    $region11: #{linear_pallas.1} parent=1 // pred_check_branch
      %14 = sbr.rel (0) target = $region13
    $region12: #{linear_pallas.1} parent=1 // pred_region
      _
    $region13: #{linear_pallas.1} parent=1 // pred_fallthru
      _
    %p15 = scmp.eq.s32.totalorder 0, 0
    // Predicated region
    $region14: #{linear_pallas.1} parent=1 // pred_check
      %p16 = pneg %p15
    $region15: #{linear_pallas.1} parent=1 // pred_check_branch
      %18 = sbr.rel (%p16) target = $region17
    $region16: #{linear_pallas.1} parent=1 // pred_region
      %19 = vst [vmem:[#allocation2] sm:$0xff] 0.0
      %20 = vst [vmem:[#allocation2 + $0x8] sm:$0xff] 0.0
    $region17: #{linear_pallas.1} parent=1 // pred_fallthru
      _
    %v21 = vld [vmem:[#allocation2] sm:$0xff]
    %v22 = vld [vmem:[#allocation2 + $0x8] sm:$0xff]
    %v23 = vld [vmem:[%s0] sm:$0xf]
    %v24 = vld [vmem:[%s0 + $0x4] sm:$0xf]
    %v25 = vld [vmem:[%s1] sm:$0xf]
    %v26 = vld [vmem:[%s1 + $0x4] sm:$0xf]
    %v27 = vld [vmem:[%s1 + $0x8] sm:$0xf]
    %v28 = vld [vmem:[%s1 + $0xc] sm:$0xf]
    %v29 = vld [vmem:[%s1 + $0x10] sm:$0xf]
    %v30 = vld [vmem:[%s1 + $0x14] sm:$0xf]
    %v31 = vld [vmem:[%s1 + $0x18] sm:$0xf]
    %v32 = vld [vmem:[%s1 + $0x1c] sm:$0xf]
    %v33 = vld [vmem:[%s1 + $0x20] sm:$0xf]
    %v34 = vld [vmem:[%s1 + $0x24] sm:$0xf]
    %v35 = vld [vmem:[%s1 + $0x28] sm:$0xf]
    %v36 = vld [vmem:[%s1 + $0x2c] sm:$0xf]
    %v37 = vld [vmem:[%s1 + $0x30] sm:$0xf]
    %v38 = vld [vmem:[%s1 + $0x34] sm:$0xf]
    %v39 = vld [vmem:[%s1 + $0x38] sm:$0xf]
    %v40 = vld [vmem:[%s1 + $0x3c] sm:$0xf]
    %v43 = vunpack.c.l.b16 %v23
    %v44 = vunpack.c.l.b16 %v24
    %v45 = vpack.c.b16 %v44, %v43
    %v63 = vunpack.c.l.b16 %v25
    %v64 = vunpack.c.l.b16 %v26
    %v65 = vunpack.c.l.b16 %v27
    %v66 = vunpack.c.l.b16 %v28
    %v67 = vunpack.c.l.b16 %v29
    %v68 = vunpack.c.l.b16 %v30
    %v69 = vunpack.c.l.b16 %v31
    %v70 = vunpack.c.l.b16 %v32
    %v71 = vunpack.c.l.b16 %v33
    %v72 = vunpack.c.l.b16 %v34
    %v73 = vunpack.c.l.b16 %v35
    %v74 = vunpack.c.l.b16 %v36
    %v75 = vunpack.c.l.b16 %v37
    %v76 = vunpack.c.l.b16 %v38
    %v77 = vunpack.c.l.b16 %v39
    %v78 = vunpack.c.l.b16 %v40
    %v79 = vpack.c.b16 %v64, %v63
    %v80 = vpack.c.b16 %v66, %v65
    %v81 = vpack.c.b16 %v68, %v67
    %v82 = vpack.c.b16 %v70, %v69
    %v83 = vpack.c.b16 %v72, %v71
    %v84 = vpack.c.b16 %v74, %v73
    %v85 = vpack.c.b16 %v76, %v75
    %v86 = vpack.c.b16 %v78, %v77
    %95 = vmatpush.bf16.msra.mxu0 %v86
    %96 = vmatpush.bf16.msra.mxu0 %v85
    %97 = vmatpush.bf16.msra.mxu0 %v84
    %98 = vmatpush.bf16.msra.mxu0 %v83
    %99 = vmatpush.bf16.msra.mxu0 %v82
    %100 = vmatpush.bf16.msra.mxu0 %v81
    %101 = vmatpush.bf16.msra.mxu0 %v80
    %102 = vmatpush.bf16.msra.mxu0 %v79
    %103 = vmatmul.bf16.gmra.mxu0 %v45
    %v104 = vpop.f32.mrf.mxu0
    %v105 = vadd.f32 0.0, %v104
    %v106 = vpop.f32.mrf.mxu0
    %v107 = vadd.f32 0.0, %v106
    %108 = vdwg.mxu0
    %v109 = vadd.f32 %v21, %v105
    %v110 = vadd.f32 %v22, %v107
    %111 = vst [vmem:[#allocation2] sm:$0xff] %v109
    %112 = vst [vmem:[#allocation2 + $0x8] sm:$0xff] %v110
    // Predicated region
    $region18: #{linear_pallas.1} parent=1 // pred_check
      %p113 = pneg %p15
    $region19: #{linear_pallas.1} parent=1 // pred_check_branch
      %115 = sbr.rel (%p113) target = $region21
    $region20: #{linear_pallas.1} parent=1 // pred_region
      %v116 = vld [vmem:[#allocation2] sm:$0xff]
      %v117 = vld [vmem:[#allocation2 + $0x8] sm:$0xff]
      %v118 = vld [vmem:[%s2] sm:$0x1]
      %v120 = vperm.slane %v118, 0
      %v122 = vadd.f32 %v116, %v120
      %v123 = vadd.f32 %v117, %v120
      %124 = vst [vmem:[#allocation3] sm:$0xff] %v122
      %125 = vst [vmem:[#allocation3 + $0x8] sm:$0xff] %v123
    $region21: #{linear_pallas.1} parent=1 // pred_fallthru
      _
    // Predicated region
    $region22: #{linear_pallas.1} parent=1 // pred_check
      _
    $region23: #{linear_pallas.1} parent=1 // pred_check_branch
      %127 = sbr.rel (0) target = $region25
    $region24: #{linear_pallas.1} parent=1 // pred_region
      %129 = vsyncadd [#allocation4], 0
      %s130 = sshll.u32 [#allocation3], 4
      %s131 = int_to_ptr.vmem [resolvable:$true] %s130
      %s132 = sshll.u32 %s3, 4
      %s133 = int_to_ptr.hbm [resolvable:$true] %s132
      %138 = dma.vmem_to_hbm [thread:$0]  %s131, 256, %s133, [#allocation4], 128, 128, 8
    $region25: #{linear_pallas.1} parent=1 // pred_fallthru
      _
    // Predicated region
    $region26: #{linear_pallas.1} parent=1 // pred_check
      _
    $region27: #{linear_pallas.1} parent=1 // pred_check_branch
      %140 = sbr.rel (0) target = $region29
    $region28: #{linear_pallas.1} parent=1 // pred_region
      %142 = dma.done [#allocation4], 256
    $region29: #{linear_pallas.1} parent=1 // pred_fallthru
      _
    %143 = vsyncpa [#allocation4], 1

</llo_original>
